<compile_context>
chip_gen: v7x
topology: tpu7x:2x2x1
jax: 0.10.0
libtpu: 0.0.40
codegen_flags: <defaults>
</compile_context>

<pallas_src>
import functools

import jax
import jax.numpy as jnp
from jax.experimental import pallas as pl
from jax.experimental.pallas import tpu as pltpu


def _round_up(n: int, m: int) -> int:
    return ((n + m - 1) // m) * m


# ----------------------------- Pallas kernel ------------------------------- #
def _lr_kernel(xm_ref, xh_ref, w_ref, out_ref, xt_ref, *, tm, stride, k, w_rows):
    """One (batch, time-tile) grid step.

    xm_ref : (1, 1, W, C)    main time slab, W = tm*stride
    xh_ref : (1, 1, H, C)    halo rows immediately following the slab
    w_ref  : (2*K*C, 2*C)    block-diagonal [[Wl, 0], [0, Wr]], rows = (tap, in_ch)
    out_ref: (1, 1, TM, 2*C)
    xt_ref : (W + H, C)      VMEM scratch: slab + halo, contiguous in time
    """
    xt_ref[:w_rows, :] = xm_ref[0, 0]
    xt_ref[w_rows:, :] = xh_ref[0, 0]

    def tap(offset):
        # rows offset, offset+stride, ..., offset+(tm-1)*stride  ->  (TM, C)
        if stride == 1:
            return xt_ref[pl.ds(offset, tm), :]
        return xt_ref[pl.ds(offset, tm, stride=stride), :]

    # Left conv taps are time offsets 0..K-1; right conv taps are K+1..2K,
    # both relative to the replicate-padded, time-major input.
    cols = [tap(a) for a in range(k)] + [tap(k + 1 + a) for a in range(k)]
    patches = jnp.concatenate(cols, axis=-1)                      # (TM, 2*K*C)
    out = jnp.dot(patches, w_ref[...], preferred_element_type=jnp.float32)
    out_ref[0, 0] = out.astype(out_ref.dtype)


# ------------------------------- wrapper ------------------------------------ #
def left_right_feature_extractor(x, w_left, w_right, kernel_size, stride,
                                 tile_m=None):
    """x: (B, C, T). w_left/w_right: (C, C, K) Conv1d weights (OIW), no bias.
    Returns (B, T_out, 2*C) with T_out = (T-1)//stride + 1."""
    B, C, T = x.shape
    K = int(kernel_size)
    s = int(stride)
    t_out = (T - 1) // s + 1

    # --- tile sizing: TM output rows per grid step (multiple of 8) ----------
    patch_row_bytes = 2 * K * C * 4
    cap = max(8, ((1 << 20) // patch_row_bytes) // 8 * 8)   # keep patch tile ~<=1MiB
    if tile_m is None:
        tm = min(512, _round_up(t_out, 8), cap)
    else:
        tm = max(8, _round_up(int(tile_m), 8))
    n_t = pl.cdiv(t_out, tm)
    t_out_pad = n_t * tm

    W = tm * s                        # input rows consumed per tile (excl. halo)
    H = _round_up(2 * K, 8)           # halo rows (covers left + right taps)
    L = n_t * W + H                   # total padded, time-major length

    # Replicate-padded, time-major input: x_pt[b, j, c] = x[b, c, clip(j-K, 0, T-1)]
    x_pt = jnp.pad(x, ((0, 0), (0, 0), (K, L - K - T)), mode="edge")
    x_pt = jnp.transpose(x_pt, (0, 2, 1))                          # (B, L, C)

    x_main = x_pt[:, :n_t * W, :].reshape(B, n_t, W, C)            # (B,n_t,W,C)
    halo_idx = (jnp.arange(n_t)[:, None] + 1) * W + jnp.arange(H)[None, :]
    x_halo = x_pt[:, halo_idx, :]                                  # (B,n_t,H,C)

    # Block-diagonal fused weight; rows ordered (tap k, in-channel).
    wl_mat = jnp.transpose(w_left, (2, 1, 0)).reshape(K * C, C)
    wr_mat = jnp.transpose(w_right, (2, 1, 0)).reshape(K * C, C)
    zeros = jnp.zeros((K * C, C), dtype=wl_mat.dtype)
    w_bd = jnp.concatenate(
        [jnp.concatenate([wl_mat, zeros], axis=1),
         jnp.concatenate([zeros, wr_mat], axis=1)], axis=0)        # (2KC, 2C)

    kernel = functools.partial(_lr_kernel, tm=tm, stride=s, k=K, w_rows=W)

    out = pl.pallas_call(
        kernel,
        out_shape=jax.ShapeDtypeStruct((B, n_t, tm, 2 * C), x.dtype),
        grid_spec=pltpu.PrefetchScalarGridSpec(
            num_scalar_prefetch=0,
            grid=(B, n_t),
            in_specs=[
                pl.BlockSpec((1, 1, W, C), lambda b, i: (b, i, 0, 0)),
                pl.BlockSpec((1, 1, H, C), lambda b, i: (b, i, 0, 0)),
                pl.BlockSpec((2 * K * C, 2 * C), lambda b, i: (0, 0)),
            ],
            out_specs=pl.BlockSpec((1, 1, tm, 2 * C), lambda b, i: (b, i, 0, 0)),
            scratch_shapes=[pltpu.VMEM((W + H, C), x.dtype)],
        ),
        compiler_params=pltpu.CompilerParams(
            dimension_semantics=("parallel", "parallel")),
    )(x_main, x_halo, w_bd)

    return out.reshape(B, t_out_pad, 2 * C)[:, :t_out, :]


# ------------------------------ reference ----------------------------------- #
def _reference(x, w_left, w_right, K, stride):
    left_in = jnp.concatenate(
        [jnp.repeat(x[:, :, :1], K, axis=2), x], axis=2)[:, :, :-1]
    right_in = jnp.concatenate(
        [x, jnp.repeat(x[:, :, -1:], K, axis=2)], axis=2)[:, :, 1:]
    dn = ("NCH", "OIH", "NCH")
    lf = jax.lax.conv_general_dilated(left_in, w_left, (stride,), "VALID",
                                      dimension_numbers=dn)
    rf = jax.lax.conv_general_dilated(right_in, w_right, (stride,), "VALID",
                                      dimension_numbers=dn)
    feats = jnp.concatenate([lf, rf], axis=1)           # (B, 2C, T_out)
    return jnp.transpose(feats, (0, 2, 1))              # (B, T_out, 2C)


if __name__ == "__main__":
    key = jax.random.PRNGKey(0)

    configs = [
        dict(B=2, C=8, T=16, K=3, stride=2, tile_m=None),   # module-sized smoke test
        dict(B=2, C=8, T=40, K=3, stride=2, tile_m=8),      # multi-tile time grid + halo
        dict(B=2, C=8, T=24, K=5, stride=1, tile_m=None),   # stride-1 path, wider kernel
    ]

    for i, cfg in enumerate(configs):
        kx, kl, kr = jax.random.split(jax.random.fold_in(key, i), 3)
        B, C, T, K, s = cfg["B"], cfg["C"], cfg["T"], cfg["K"], cfg["stride"]
        x = jax.random.normal(kx, (B, C, T), dtype=jnp.float32)
        w_left = jax.random.normal(kl, (C, C, K), dtype=jnp.float32) * 0.1
        w_right = jax.random.normal(kr, (C, C, K), dtype=jnp.float32) * 0.1

        out = left_right_feature_extractor(x, w_left, w_right, K, s,
                                           tile_m=cfg["tile_m"])
        out = jax.block_until_ready(out)

        ref = _reference(x, w_left, w_right, K, s)
        assert out.shape == ref.shape, (cfg, out.shape, ref.shape)
        assert jnp.allclose(out, ref, atol=1e-4, rtol=1e-4), f"mismatch: {cfg}"

    print("KERNEL_OK")
</pallas_src>

<mosaic_0001>
module attributes {stable_mosaic.version = 11 : i64} {
  func.func @_lr_kernel(%arg0: i32, %arg1: i32, %arg2: memref<1x1x16x8xf32, #tpu.memory_space<vmem>>, %arg3: memref<1x1x8x8xf32, #tpu.memory_space<vmem>>, %arg4: memref<48x16xf32, #tpu.memory_space<vmem>>, %arg5: memref<1x1x8x16xf32, #tpu.memory_space<vmem>>, %arg6: memref<24x8xf32, #tpu.memory_space<vmem>>) attributes {dimension_semantics = [#tpu.dimension_semantics<parallel>, #tpu.dimension_semantics<parallel>], iteration_bounds = array<i64: 2, 1>, scalar_prefetch = 0 : i64, scratch_operands = 1 : i64, tpu.core_type = #tpu.core_type<tc>, window_params = [{transform_indices = @transform_0, window_bounds = array<i64: 1, 1, 16, 8>}, {transform_indices = @transform_1, window_bounds = array<i64: 1, 1, 8, 8>}, {pipeline_mode = #tpu.pipeline_mode<synchronous>, transform_indices = @transform_2, window_bounds = array<i64: 48, 16>}, {transform_indices = @transform_3, window_bounds = array<i64: 1, 1, 8, 16>}]} {
    %c0 = arith.constant 0 : index
    %c0_0 = arith.constant 0 : index
    %c0_1 = arith.constant 0 : index
    %c0_2 = arith.constant 0 : index
    %0 = vector.load %arg2[%c0, %c0_0, %c0_1, %c0_2] : memref<1x1x16x8xf32, #tpu.memory_space<vmem>>, vector<1x1x16x8xf32>
    %1 = vector.shape_cast %0 : vector<1x1x16x8xf32> to vector<16x8xf32>
    %c0_3 = arith.constant 0 : index
    %c0_4 = arith.constant 0 : index
    %2 = vector.load %arg6[%c0_3, %c0_4] : memref<24x8xf32, #tpu.memory_space<vmem>>, vector<16x8xf32>
    tpu.vector_store %arg6[%c0_3, %c0_4], %1 {strides = array<i32>} : memref<24x8xf32, #tpu.memory_space<vmem>>, vector<16x8xf32>,
    %c0_5 = arith.constant 0 : index
    %c0_6 = arith.constant 0 : index
    %c0_7 = arith.constant 0 : index
    %c0_8 = arith.constant 0 : index
    %3 = vector.load %arg3[%c0_5, %c0_6, %c0_7, %c0_8] : memref<1x1x8x8xf32, #tpu.memory_space<vmem>>, vector<1x1x8x8xf32>
    %4 = vector.shape_cast %3 : vector<1x1x8x8xf32> to vector<8x8xf32>
    %c16 = arith.constant 16 : index
    %c0_9 = arith.constant 0 : index
    %5 = vector.load %arg6[%c16, %c0_9] : memref<24x8xf32, #tpu.memory_space<vmem>>, vector<8x8xf32>
    tpu.vector_store %arg6[%c16, %c0_9], %4 {strides = array<i32>} : memref<24x8xf32, #tpu.memory_space<vmem>>, vector<8x8xf32>,
    %c0_10 = arith.constant 0 : index
    %c0_11 = arith.constant 0 : index
    %6 = tpu.strided_load %arg6[%c0_10, %c0_11] {strides = array<i32: 2, 1>} : memref<24x8xf32, #tpu.memory_space<vmem>>, vector<8x8xf32>
    %c1 = arith.constant 1 : index
    %c0_12 = arith.constant 0 : index
    %7 = tpu.strided_load %arg6[%c1, %c0_12] {strides = array<i32: 2, 1>} : memref<24x8xf32, #tpu.memory_space<vmem>>, vector<8x8xf32>
    %c2 = arith.constant 2 : index
    %c0_13 = arith.constant 0 : index
    %8 = tpu.strided_load %arg6[%c2, %c0_13] {strides = array<i32: 2, 1>} : memref<24x8xf32, #tpu.memory_space<vmem>>, vector<8x8xf32>
    %c4 = arith.constant 4 : index
    %c0_14 = arith.constant 0 : index
    %9 = tpu.strided_load %arg6[%c4, %c0_14] {strides = array<i32: 2, 1>} : memref<24x8xf32, #tpu.memory_space<vmem>>, vector<8x8xf32>
    %c5 = arith.constant 5 : index
    %c0_15 = arith.constant 0 : index
    %10 = tpu.strided_load %arg6[%c5, %c0_15] {strides = array<i32: 2, 1>} : memref<24x8xf32, #tpu.memory_space<vmem>>, vector<8x8xf32>
    %c6 = arith.constant 6 : index
    %c0_16 = arith.constant 0 : index
    %11 = tpu.strided_load %arg6[%c6, %c0_16] {strides = array<i32: 2, 1>} : memref<24x8xf32, #tpu.memory_space<vmem>>, vector<8x8xf32>
    %12 = tpu.concatenate %6, %7, %8, %9, %10, %11 in 1 : vector<8x8xf32>, vector<8x8xf32>, vector<8x8xf32>, vector<8x8xf32>, vector<8x8xf32>, vector<8x8xf32> -> vector<8x48xf32>
    %c0_17 = arith.constant 0 : index
    %c0_18 = arith.constant 0 : index
    %13 = vector.load %arg4[%c0_17, %c0_18] : memref<48x16xf32, #tpu.memory_space<vmem>>, vector<48x16xf32>
    %cst = arith.constant dense<0.000000e+00> : vector<8x16xf32>
    %14 = tpu.matmul %12, %13, %cst {dimension_numbers = #tpu.dot_dimension_numbers<[1], [0], [0], [1], [0, 0, 1, 1], [], []>} : vector<8x48xf32>, vector<48x16xf32>, vector<8x16xf32> -> vector<8x16xf32>
    %c0_19 = arith.constant 0 : index
    %c0_20 = arith.constant 0 : index
    %c0_21 = arith.constant 0 : index
    %c0_22 = arith.constant 0 : index
    %15 = vector.load %arg5[%c0_19, %c0_20, %c0_21, %c0_22] : memref<1x1x8x16xf32, #tpu.memory_space<vmem>>, vector<1x1x8x16xf32>
    %16 = vector.shape_cast %15 : vector<1x1x8x16xf32> to vector<8x16xf32>
    %17 = vector.shape_cast %14 : vector<8x16xf32> to vector<1x1x8x16xf32>
    tpu.vector_store %arg5[%c0_19, %c0_20, %c0_21, %c0_22], %17 {strides = array<i32>} : memref<1x1x8x16xf32, #tpu.memory_space<vmem>>, vector<1x1x8x16xf32>,
    return
  }
  func.func @transform_0(%arg0: i32, %arg1: i32) -> (i32, i32, i32, i32) {
    %c0_i32 = arith.constant 0 : i32
    %c0_i32_0 = arith.constant 0 : i32
    %c0_i32_1 = arith.constant 0 : i32
    return %arg0, %arg1, %c0_i32, %c0_i32_0 : i32, i32, i32, i32
  }
  func.func @transform_1(%arg0: i32, %arg1: i32) -> (i32, i32, i32, i32) {
    %c0_i32 = arith.constant 0 : i32
    %c0_i32_0 = arith.constant 0 : i32
    %c0_i32_1 = arith.constant 0 : i32
    return %arg0, %arg1, %c0_i32, %c0_i32_0 : i32, i32, i32, i32
  }
  func.func @transform_2(%arg0: i32, %arg1: i32) -> (i32, i32) {
    %c0_i32 = arith.constant 0 : i32
    %c0_i32_0 = arith.constant 0 : i32
    %c0_i32_1 = arith.constant 0 : i32
    return %c0_i32, %c0_i32_0 : i32, i32
  }
  func.func @transform_3(%arg0: i32, %arg1: i32) -> (i32, i32, i32, i32) {
    %c0_i32 = arith.constant 0 : i32
    %c0_i32_0 = arith.constant 0 : i32
    %c0_i32_1 = arith.constant 0 : i32
    return %arg0, %arg1, %c0_i32, %c0_i32_0 : i32, i32, i32, i32
  }
}

</mosaic_0001>

<llo_original>
// kernel: tpu_custom_call.1
$region0: #{tpu_custom_call.1}
  #allocation0 [shape = 'u32[]', space=smem, size = 0x4, offset = 0x4, fixed_abs, tag = 'smem constant byte address 0x4 - core index']
  #allocation1 [shape = 'u32[144,128]{1,0:T(1,128)}', space=vmem, size = 0x12000, scoped, tag = 'internal scratch']
  #allocation2 [shape = 'f32[24,8]{1,0:T(8,128)}', space=vmem, size = 0x3000, scoped, tag = 'scratch operand']
  %s0 = inlined_call_operand.vmem [shape: f32[2,1,16,8], index: 0, kind: input, shape index: {}]
  %s1 = inlined_call_operand.vmem [shape: f32[2,1,8,8], index: 1, kind: input, shape index: {}]
  %s2 = inlined_call_operand.vmem [shape: f32[48,16], index: 2, kind: input, shape index: {}]
  %s3 = inlined_call_operand.hbm [shape: f32[2,1,8,16], index: 3, kind: output, shape index: {}]
  %s4 = sld [smem:[#allocation0]]
  $region45: #{tpu_custom_call.1} parent=0
    _
  %s6 = ssub.s32 1, %s4
  %s7 = scalar_select 0, %s6, %s4
  $region1: #{tpu_custom_call.1} parent=0
    #allocation3 [shape = 'u8[8192]{0}', space=vmem, size = 0x2000, scoped, tag = 'output window, operand 0']
    #allocation4 [shape = 's32[2]{0}', space=sflag, size = 0x8, scoped, tag = 'scoped memory for tpu_custom_call.1']
    %8 = vsyncpa [#allocation4], 0
    %s9 = scalar_lea.sflag [#allocation4], 1
    %10 = vsyncpa %s9, 0
    loop: start=0, step=1, limit=4
    $region2: #{tpu_custom_call.1} parent=1 // loop_pre_header
      _
    $region3: #{tpu_custom_call.1} parent=1 // loop_header
      %s12 = sphi 0, %s16
      %p13 = scmp.ge.s32.totalorder %s12, 4
      %s19 = sphi 0, %s31
      %s20 = sphi 0, %s27
      %s21 = sphi 0, %s19
      %s22 = sphi 0, %s20
      %s23 = sphi 0, %s21
      %s24 = sphi 0, %s22
      %s36 = sphi 0, %s38
      %s39 = sphi 0, %s36
      %s40 = sphi 0, %s39
      %s56 = sphi 0, %s40
      %s64 = sphi 0, %s66
      %s67 = sphi 0, %s64
      %s68 = sphi 0, %s67
      %s84 = sphi 0, %s68
      %s88 = sphi 0, %s88
      %s90 = sphi 0, %s88
      %s91 = sphi 0, %s90
      %s105 = sphi 0, %s91
      %s113 = sphi 0, %s115
      %s116 = sphi 0, %s113
      %s117 = sphi 0, %s116
      %s133 = sphi 0, %s117
    $region4: #{tpu_custom_call.1} parent=1 // loop_header_branch
      %15 = sbr.rel (%p13) target = $region8
    $region5: #{tpu_custom_call.1} parent=1 // loop_body
      %s17 = ssub.s32 %s12, 1
      %s18 = ssub.s32 %s12, 2
      %s25 = sadd.s32 1, %s20
      %p26 = scmp.ge.s32.totalorder %s25, 1
      %s27 = scalar_select %p26, 0, %s25
      %s28 = sadd.s32 1, %s19
      %s29 = scalar_select %p26, %s28, %s19
      %p30 = scmp.ge.s32.totalorder %s29, 2
      %s31 = scalar_select %p30, 0, %s29
      %s32 = ssub.s32 %s19, %s31
      %s33 = ssub.s32 %s20, %s27
      %s34 = sor.u32 %s32, %s33
      %p35 = scmp.eq.s32.totalorder %s34, 0
      %s37 = sadd.s32 %s36, 1
      %s38 = scalar_select %p35, %s36, %s37
      %p41 = pneg %p35
      %p42 = scmp.eq.s32.totalorder %s12, 1
      %p43 = por %p41, %p42
      %p44 = scmp.ne.s32.totalorder %s36, %s39
      %p45 = scmp.eq.s32.totalorder %s12, 0
      %p46 = por %p44, %p45
      %p47 = scmp.ne.s32.totalorder %s36, %s39
      %p48 = scmp.eq.s32.totalorder %s17, 1
      %p49 = por %p47, %p48
      %p50 = scmp.ne.s32.totalorder %s39, %s40
      %p51 = scmp.eq.s32.totalorder %s17, 0
      %p52 = por %p50, %p51
      %p53 = scmp.ne.s32.totalorder %s39, %s40
      %p54 = scmp.eq.s32.totalorder %s18, 1
      %p55 = por %p53, %p54
      %p57 = scmp.ne.s32.totalorder %s40, %s56
      %p58 = scmp.eq.s32.totalorder %s18, 0
      %p59 = por %p57, %p58
      %s60 = ssub.s32 %s19, %s31
      %s61 = ssub.s32 %s20, %s27
      %s62 = sor.u32 %s60, %s61
      %p63 = scmp.eq.s32.totalorder %s62, 0
      %s65 = sadd.s32 %s64, 1
      %s66 = scalar_select %p63, %s64, %s65
      %p69 = pneg %p63
      %p70 = scmp.eq.s32.totalorder %s12, 1
      %p71 = por %p69, %p70
      %p72 = scmp.ne.s32.totalorder %s64, %s67
      %p73 = scmp.eq.s32.totalorder %s12, 0
      %p74 = por %p72, %p73
      %p75 = scmp.ne.s32.totalorder %s64, %s67
      %p76 = scmp.eq.s32.totalorder %s17, 1
      %p77 = por %p75, %p76
      %p78 = scmp.ne.s32.totalorder %s67, %s68
      %p79 = scmp.eq.s32.totalorder %s17, 0
      %p80 = por %p78, %p79
      %p81 = scmp.ne.s32.totalorder %s67, %s68
      %p82 = scmp.eq.s32.totalorder %s18, 1
      %p83 = por %p81, %p82
      %p85 = scmp.ne.s32.totalorder %s68, %s84
      %p86 = scmp.eq.s32.totalorder %s18, 0
      %p87 = por %p85, %p86
      %s89 = sadd.s32 %s88, 1
      %p92 = scmp.eq.s32.totalorder %s12, 1
      %p93 = scmp.ne.s32.totalorder %s88, %s90
      %p94 = scmp.eq.s32.totalorder %s12, 0
      %p95 = por %p93, %p94
      %p96 = scmp.ne.s32.totalorder %s88, %s90
      %p97 = scmp.eq.s32.totalorder %s17, 1
      %p98 = por %p96, %p97
      %p99 = scmp.ne.s32.totalorder %s90, %s91
      %p100 = scmp.eq.s32.totalorder %s17, 0
      %p101 = por %p99, %p100
      %p102 = scmp.ne.s32.totalorder %s90, %s91
      %p103 = scmp.eq.s32.totalorder %s18, 1
      %p104 = por %p102, %p103
      %p106 = scmp.ne.s32.totalorder %s91, %s105
      %p107 = scmp.eq.s32.totalorder %s18, 0
      %p108 = por %p106, %p107
      %s109 = ssub.s32 %s19, %s31
      %s110 = ssub.s32 %s20, %s27
      %s111 = sor.u32 %s109, %s110
      %p112 = scmp.eq.s32.totalorder %s111, 0
      %s114 = sadd.s32 %s113, 1
      %s115 = scalar_select %p112, %s113, %s114
      %p118 = pneg %p112
      %p119 = scmp.eq.s32.totalorder %s12, 1
      %p120 = por %p118, %p119
      %p121 = scmp.ne.s32.totalorder %s113, %s116
      %p122 = scmp.eq.s32.totalorder %s12, 0
      %p123 = por %p121, %p122
      %p124 = scmp.ne.s32.totalorder %s113, %s116
      %p125 = scmp.eq.s32.totalorder %s17, 1
      %p126 = por %p124, %p125
      %p127 = scmp.ne.s32.totalorder %s116, %s117
      %p128 = scmp.eq.s32.totalorder %s17, 0
      %p129 = por %p127, %p128
      %p130 = scmp.ne.s32.totalorder %s116, %s117
      %p131 = scmp.eq.s32.totalorder %s18, 1
      %p132 = por %p130, %p131
      %p134 = scmp.ne.s32.totalorder %s117, %s133
      %p135 = scmp.eq.s32.totalorder %s18, 0
      %p136 = por %p134, %p135
      %p137 = scmp.le.s32.totalorder 1, %s12
      %p138 = scmp.lt.s32.totalorder %s12, 3
      %p139 = pnand %p137, %p138
      %p140 = pneg %p139
      // Predicated region
      $region9: #{tpu_custom_call.1} parent=5 // pred_check
        _
      $region10: #{tpu_custom_call.1} parent=5 // pred_check_branch
        %142 = sbr.rel (%p139) target = $region12
      $region11: #{tpu_custom_call.1} parent=5 // pred_region
        %s143 = ssub.s32 %s12, 1
        // Predicated region
        $region13: #{tpu_custom_call.1} parent=11 // pred_check
          %p144 = pneg %p101
        $region14: #{tpu_custom_call.1} parent=11 // pred_check_branch
          %146 = sbr.rel (%p144) target = $region16
        $region15: #{tpu_custom_call.1} parent=11 // pred_region
          _
        $region16: #{tpu_custom_call.1} parent=11 // pred_fallthru
          _
      $region12: #{tpu_custom_call.1} parent=5 // pred_fallthru
        _
      %p147 = scmp.lt.s32.totalorder %s12, 2
      // Predicated region
      $region17: #{tpu_custom_call.1} parent=5 // pred_check
        %p148 = pneg %p147
      $region18: #{tpu_custom_call.1} parent=5 // pred_check_branch
        %150 = sbr.rel (%p148) target = $region20
      $region19: #{tpu_custom_call.1} parent=5 // pred_region
        // Predicated region
        $region21: #{tpu_custom_call.1} parent=19 // pred_check
          %p151 = pneg %p46
        $region22: #{tpu_custom_call.1} parent=19 // pred_check_branch
          %153 = sbr.rel (%p151) target = $region24
        $region23: #{tpu_custom_call.1} parent=19 // pred_region
          %p154 = scmp.lt.s32.totalorder %s19, 1
          %s155 = scalar_select %p154, %s19, 1
          %p156 = scmp.lt.s32.totalorder %s20, 0
          %s157 = scalar_select %p156, %s20, 0
          %s158 = smul.addr %s157, 2
          %s159 = smul.addr %s155, 2
          %s160 = sadd.s32 %s158, %s159
          %s161 = smul.addr %s160, 8
          %s162 = scalar_lea.vmem %s0, %s161
        $region24: #{tpu_custom_call.1} parent=19 // pred_fallthru
          _
        // Predicated region
        $region25: #{tpu_custom_call.1} parent=19 // pred_check
          %p163 = pneg %p74
        $region26: #{tpu_custom_call.1} parent=19 // pred_check_branch
          %165 = sbr.rel (%p163) target = $region28
        $region27: #{tpu_custom_call.1} parent=19 // pred_region
          %p166 = scmp.lt.s32.totalorder %s19, 1
          %s167 = scalar_select %p166, %s19, 1
          %p168 = scmp.lt.s32.totalorder %s20, 0
          %s169 = scalar_select %p168, %s20, 0
          %s170 = sadd.s32 %s169, %s167
          %s171 = smul.addr %s170, 8
          %s172 = scalar_lea.vmem %s1, %s171
        $region28: #{tpu_custom_call.1} parent=19 // pred_fallthru
          _
      $region20: #{tpu_custom_call.1} parent=5 // pred_fallthru
        _
      %p173 = scmp.le.s32.totalorder 1, %s12
      %p174 = scmp.lt.s32.totalorder %s12, 3
      %p175 = pnand %p173, %p174
      %p176 = pneg %p175
      // Predicated region
      $region29: #{tpu_custom_call.1} parent=5 // pred_check
        _
      $region30: #{tpu_custom_call.1} parent=5 // pred_check_branch
        %178 = sbr.rel (%p175) target = $region32
      $region31: #{tpu_custom_call.1} parent=5 // pred_region
        %s179 = ssub.s32 %s12, 1
        %p180 = scmp.lt.s32.totalorder %s21, 1
        %s181 = scalar_select %p180, %s21, 1
        %p182 = scmp.lt.s32.totalorder %s22, 0
        %s183 = scalar_select %p182, %s22, 0
        %s184 = smul.addr %s183, 2
        %s185 = smul.addr %s181, 2
        %s186 = sadd.s32 %s184, %s185
        %s187 = smul.addr %s186, 8
        %s188 = scalar_lea.vmem %s0, %s187
        %p189 = pneg %p52
        %p190 = pneg %p49
        %p191 = scmp.lt.s32.totalorder %s21, 1
        %s192 = scalar_select %p191, %s21, 1
        %p193 = scmp.lt.s32.totalorder %s22, 0
        %s194 = scalar_select %p193, %s22, 0
        %s195 = sadd.s32 %s194, %s192
        %s196 = smul.addr %s195, 8
        %s197 = scalar_lea.vmem %s1, %s196
        %p198 = pneg %p80
        %p199 = pneg %p77
        %p200 = pneg %p101
        %p201 = pneg %p98
        %p202 = pneg %p129
        %p203 = pneg %p126
        %s204 = sand.u32 %s116, 1
        %s205 = scalar_lea.sflag [#allocation4], %s204
        %s206 = sand.u32 %s116, 1
        %s207 = smul.addr %s206, 8
        %s208 = scalar_lea.vmem [#allocation3], %s207
        %p209 = scmp.lt.s32.totalorder %s21, 1
        %s210 = scalar_select %p209, %s21, 1
        %p211 = scmp.lt.s32.totalorder %s22, 0
        %s212 = scalar_select %p211, %s22, 0
        %s213 = smul.addr %s212, 2
        %s214 = smul.addr %s210, 2
        %s215 = sadd.s32 %s213, %s214
        %s216 = smul.addr %s215, 8
        %s217 = scalar_lea.vmem %s0, %s216
        %p218 = scmp.lt.s32.totalorder %s21, 1
        %s219 = scalar_select %p218, %s21, 1
        %p220 = scmp.lt.s32.totalorder %s22, 0
        %s221 = scalar_select %p220, %s22, 0
        %s222 = sadd.s32 %s221, %s219
        %s223 = smul.addr %s222, 8
        %s224 = scalar_lea.vmem %s1, %s223
        %v225 = vld [vmem:[%s217] sm:$0xff]
        %v226 = vld [vmem:[%s217 + $0x8] sm:$0xff]
        %vm227 = vcmask 64512
        %228 = vst.msk [vmem:[#allocation2] sm:$0xff] %vm227, %v225
        %229 = vst.msk [vmem:[#allocation2 + $0x8] sm:$0xff] %vm227, %v226
        %v230 = vld [vmem:[%s224] sm:$0xff]
        %231 = vst.msk [vmem:[#allocation2 + $0x10] sm:$0xff] %vm227, %v230
        %v232 = vld [vmem:[#allocation2] ss:$2 sm:$0xff]
        %s233 = scalar_lea.vmem [#allocation2], 1
        %v234 = vld [vmem:[%s233] ss:$2 sm:$0xff]
        %s235 = scalar_lea.vmem [#allocation2], 2
        %v236 = vld [vmem:[%s235] ss:$2 sm:$0xff]
        %s237 = scalar_lea.vmem [#allocation2], 4
        %v238 = vld [vmem:[%s237] ss:$2 sm:$0xff]
        %s239 = scalar_lea.vmem [#allocation2], 5
        %v240 = vld [vmem:[%s239] ss:$2 sm:$0xff]
        %s241 = scalar_lea.vmem [#allocation2], 6
        %v242 = vld [vmem:[%s241] ss:$2 sm:$0xff]
        %244 = vrot.lane.b32.xlu0 %v234, 8
        %v245 = vpop.permute.xlu0 %244
        %248 = vrot.lane.b32.xlu0 %v236, 16
        %v249 = vpop.permute.xlu0 %248
        %252 = vrot.lane.b32.xlu0 %v238, 24
        %v253 = vpop.permute.xlu0 %252
        %256 = vrot.lane.b32.xlu0 %v240, 32
        %v257 = vpop.permute.xlu0 %256
        %260 = vrot.lane.b32.xlu0 %v242, 40
        %v261 = vpop.permute.xlu0 %260
        %v263 = vsel %vm227, %v232, %v245
        %vm264 = vcmask 130048
        %v265 = vsel %vm264, %v263, %v249
        %vm266 = vcmask 195584
        %v267 = vsel %vm266, %v265, %v253
        %vm268 = vcmask 261120
        %v269 = vsel %vm268, %v267, %v257
        %vm270 = vcmask 326656
        %v271 = vsel %vm270, %v269, %v261
        %v272 = vld [vmem:[%s2] sm:$0xff]
        %v273 = vld [vmem:[%s2 + $0x8] sm:$0xff]
        %v274 = vld [vmem:[%s2 + $0x10] sm:$0xff]
        %v275 = vld [vmem:[%s2 + $0x18] sm:$0xff]
        %v276 = vld [vmem:[%s2 + $0x20] sm:$0xff]
        %v277 = vld [vmem:[%s2 + $0x28] sm:$0xff]
        %vm278 = vcmask 392192
        %v280 = vsel %vm278, %v271, 0
        %282 = vmatprep.subr.mxu0 0.0
        %283 = vmatpush1.msra.mxu0 %v272
        %284 = vmatprep.subr.mxu0 0.0
        %285 = vmatpush1.msra.mxu0 %v273
        %286 = vmatprep.subr.mxu0 0.0
        %287 = vmatpush1.msra.mxu0 %v274
        %288 = vmatprep.subr.mxu0 0.0
        %289 = vmatpush1.msra.mxu0 %v275
        %290 = vmatprep.subr.mxu0 0.0
        %291 = vmatpush1.msra.mxu0 %v276
        %292 = vmatprep.subr.mxu0 0.0
        %293 = vmatpush1.msra.mxu0 %v277
        %294 = vmatprep.subr.mxu0 0.0
        %295 = vmatpush1.msra.mxu0 0.0
        %296 = vmatprep.subr.mxu0 0.0
        %297 = vmatpush1.msra.mxu0 0.0
        %298 = vmatprep.subr.mxu0 0.0
        %299 = vmatpush1.msra.mxu0 0.0
        %300 = vmatprep.subr.mxu0 0.0
        %301 = vmatpush1.msra.mxu0 0.0
        %302 = vmatprep.subr.mxu0 0.0
        %303 = vmatpush1.msra.mxu0 0.0
        %304 = vmatprep.subr.mxu0 0.0
        %305 = vmatpush1.msra.mxu0 0.0
        %306 = vmatprep.subr.mxu0 0.0
        %307 = vmatpush1.msra.mxu0 0.0
        %308 = vmatprep.subr.mxu0 0.0
        %309 = vmatpush1.msra.mxu0 0.0
        %310 = vmatprep.subr.mxu0 0.0
        %311 = vmatpush1.msra.mxu0 0.0
        %312 = vmatprep.subr.mxu0 0.0
        %313 = vmatpush1.msra.mxu0 0.0
        %314 = vmatprep.subr.mxu0 0.0
        %315 = vmatpush1.msra.mxu0 0.0
        %316 = vmatprep.subr.mxu0 0.0
        %317 = vmatpush1.msra.mxu0 0.0
        %318 = vmatprep.subr.mxu0 0.0
        %319 = vmatpush1.msra.mxu0 0.0
        %320 = vmatprep.subr.mxu0 0.0
        %321 = vmatpush1.msra.mxu0 0.0
        %322 = vmatprep.subr.mxu0 0.0
        %323 = vmatpush1.msra.mxu0 0.0
        %324 = vmatprep.subr.mxu0 0.0
        %325 = vmatpush1.msra.mxu0 0.0
        %326 = vmatprep.subr.mxu0 0.0
        %327 = vmatpush1.msra.mxu0 0.0
        %328 = vmatprep.subr.mxu0 0.0
        %329 = vmatpush1.msra.mxu0 0.0
        %330 = vmatprep.subr.mxu0 0.0
        %331 = vmatpush1.msra.mxu0 0.0
        %332 = vmatprep.subr.mxu0 0.0
        %333 = vmatpush1.msra.mxu0 0.0
        %334 = vmatprep.subr.mxu0 0.0
        %335 = vmatpush1.msra.mxu0 0.0
        %336 = vmatprep.subr.mxu0 0.0
        %337 = vmatpush1.msra.mxu0 0.0
        %338 = vmatprep.subr.mxu0 0.0
        %339 = vmatpush1.msra.mxu0 0.0
        %340 = vmatprep.subr.mxu0 0.0
        %341 = vmatpush1.msra.mxu0 0.0
        %342 = vmatprep.subr.mxu0 0.0
        %343 = vmatpush1.msra.mxu0 0.0
        %344 = vmatprep.subr.mxu0 0.0
        %345 = vmatpush1.msra.mxu0 0.0
        %346 = vmatprep.mubr.f32.mxu0 0.0
        %347 = vmatmul.mubr.f32.gmra.mrb[0].mxu0 %v280
        %v348 = vpop.f32.mrb[0].mxu0
        %v349 = vadd.f32 0.0, %v348
        %v350 = vpop.f32.mrb[0].mxu0
        %351 = vdwg.mxu0
        %352 = vst.msk [vmem:[%s208] sm:$0xff] %vm264, %v349
        %s353 = sand.u32 %s116, 1
        %s354 = scalar_lea.sflag [#allocation4], %s353
        %s355 = sand.u32 %s116, 1
        %s356 = smul.addr %s355, 8
        %s357 = scalar_lea.vmem [#allocation3], %s356
        // Predicated region
        $region33: #{tpu_custom_call.1} parent=31 // pred_check
          %p358 = pneg %p126
        $region34: #{tpu_custom_call.1} parent=31 // pred_check_branch
          %360 = sbr.rel (%p358) target = $region36
        $region35: #{tpu_custom_call.1} parent=31 // pred_region
          %s362 = ssub.s32 128, 128
          %363 = vsyncadd %s354, %s362
          %s364 = sadd.s32 %s22, %s21
          %s365 = smul.addr %s364, 128
          %s366 = scalar_lea.hbm %s3, %s365
          %s368 = sshll.u32 %s357, 4
          %s369 = int_to_ptr.vmem [resolvable:$true] %s368
          %371 = dma.vmem_to_hbm [thread:$0]  %s369, 128, %s366, %s354
        $region36: #{tpu_custom_call.1} parent=31 // pred_fallthru
          _
      $region32: #{tpu_custom_call.1} parent=5 // pred_fallthru
        _
      %p372 = scmp.le.s32.totalorder 2, %s12
      // Predicated region
      $region37: #{tpu_custom_call.1} parent=5 // pred_check
        %p373 = pneg %p372
      $region38: #{tpu_custom_call.1} parent=5 // pred_check_branch
        %375 = sbr.rel (%p373) target = $region40
      $region39: #{tpu_custom_call.1} parent=5 // pred_region
        %s376 = ssub.s32 %s12, 2
        // Predicated region
        $region41: #{tpu_custom_call.1} parent=39 // pred_check
          %p377 = pneg %p132
        $region42: #{tpu_custom_call.1} parent=39 // pred_check_branch
          %379 = sbr.rel (%p377) target = $region44
        $region43: #{tpu_custom_call.1} parent=39 // pred_region
          %s380 = sand.u32 %s117, 1
          %s381 = scalar_lea.sflag [#allocation4], %s380
          %s382 = sand.u32 %s117, 1
          %s383 = smul.addr %s382, 8
          %s384 = scalar_lea.vmem [#allocation3], %s383
          %385 = dma.done %s381, 128
        $region44: #{tpu_custom_call.1} parent=39 // pred_fallthru
          _
      $region40: #{tpu_custom_call.1} parent=5 // pred_fallthru
        _
    $region6: #{tpu_custom_call.1} parent=1 // loop_footer
      %s16 = sadd.s32 1, %s12
    $region7: #{tpu_custom_call.1} parent=1 // loop_footer_branch
      %11 = sbr.rel target = $region3
    $region8: #{tpu_custom_call.1} parent=1 // loop_exit
      _
    %386 = vsyncpa [#allocation4], 1
    %s387 = scalar_lea.sflag [#allocation4], 1
    %388 = vsyncpa %s387, 1

</llo_original>
